<compile_context>
chip_gen: v7x
topology: tpu7x:2x2x1
jax: 0.10.0
libtpu: 0.0.40
codegen_flags: <defaults>
</compile_context>

<pallas_src>
import jax
import jax.numpy as jnp
from jax.experimental import pallas as pl
from jax.experimental.pallas import tpu as pltpu


def _round_up(x, m):
    return ((x + m - 1) // m) * m


# ----------------------------- Pallas kernel -------------------------------

def _make_loss_kernel(T, Mm, Mn, n_inner, has_normals):
    inv_mm = 1.0 / float(Mm)
    inv_mn = 1.0 / float(Mn)

    def kernel(*refs):
        if has_normals:
            (pred_ref, ngrad_ref, mgrad_ref, normals_ref,
             out_ref, acc_sdf, acc_eik, acc_nrm) = refs
        else:
            pred_ref, ngrad_ref, out_ref, acc_sdf, acc_eik = refs
            mgrad_ref = normals_ref = acc_nrm = None

        c = pl.program_id(0)          # core / partial-sum row
        i = pl.program_id(1)          # point-tile step (reduction axis)

        @pl.when(i == 0)
        def _init():
            acc_sdf[...] = jnp.zeros_like(acc_sdf)
            acc_eik[...] = jnp.zeros_like(acc_eik)
            if has_normals:
                acc_nrm[...] = jnp.zeros_like(acc_nrm)

        # global point index of every lane in this tile (masks out padding and
        # the repeated clamped tiles of the shorter stream).
        t = c * n_inner + i
        lane = jax.lax.broadcasted_iota(jnp.int32, (1, T), 1)
        gidx = t * T + lane
        in_m = gidx < Mm
        in_n = gidx < Mn

        # --- sdf term: sum(|pred|) ---
        p = pred_ref[...].astype(jnp.float32)                       # (1, T)
        acc_sdf[...] += jnp.where(in_m, jnp.abs(p), 0.0)

        # --- eikonal term: sum((||grad|| - 1)^2), x*x+y*y+z*z from 3 sublane rows
        gx = ngrad_ref[0:1, :].astype(jnp.float32)
        gy = ngrad_ref[1:2, :].astype(jnp.float32)
        gz = ngrad_ref[2:3, :].astype(jnp.float32)
        gn = jnp.sqrt(gx * gx + gy * gy + gz * gz)                  # (1, T)
        acc_eik[...] += jnp.where(in_n, (gn - 1.0) ** 2, 0.0)

        # --- normals term: sum(||grad - normals||) ---
        if has_normals:
            dx = mgrad_ref[0:1, :].astype(jnp.float32) - normals_ref[0:1, :].astype(jnp.float32)
            dy = mgrad_ref[1:2, :].astype(jnp.float32) - normals_ref[1:2, :].astype(jnp.float32)
            dz = mgrad_ref[2:3, :].astype(jnp.float32) - normals_ref[2:3, :].astype(jnp.float32)
            dn = jnp.sqrt(dx * dx + dy * dy + dz * dz)
            acc_nrm[...] += jnp.where(in_m, dn, 0.0)

        @pl.when(i == n_inner - 1)
        def _finalize():
            s_sdf = jnp.sum(acc_sdf[...]) * inv_mm     # per-core partial mean
            s_eik = jnp.sum(acc_eik[...]) * inv_mn
            if has_normals:
                s_nrm = jnp.sum(acc_nrm[...]) * inv_mm
            else:
                s_nrm = jnp.float32(0.0)
            col = jax.lax.broadcasted_iota(jnp.int32, (1, 128), 1)
            out_ref[...] = (s_sdf * (col == 0)
                            + s_eik * (col == 1)
                            + s_nrm * (col == 2)).astype(jnp.float32)

    return kernel


def _stream_spec(rows, T, n_blocks, n_inner):
    # Clamp the tile index so the shorter stream never reads OOB; the repeated
    # final block is DMA'd at most once more and its lanes are masked out.
    return pl.BlockSpec(
        (rows, T),
        lambda c, i: (0, jnp.minimum(c * n_inner + i, n_blocks - 1)))


def loss_igr_pallas(mnfld_pred, nonmnfld_grad, mnfld_grad=None, normals=None,
                    latent=None, grad_lambda=0.1, normals_lambda=1.0,
                    latent_lambda=0.001, tile_lanes=2048):
    """Lane-dense inputs:
         mnfld_pred    (1, Mm)
         nonmnfld_grad (3, Mn)
         mnfld_grad    (3, Mm)   (only used when normals is given)
         normals       (3, Mm)
         latent        (B, L)
    """
    has_normals = normals is not None
    has_latent = latent is not None

    Mm = int(mnfld_pred.shape[-1])
    Mn = int(nonmnfld_grad.shape[-1])

    T = max(128, min(int(tile_lanes), _round_up(max(Mm, Mn), 128)))
    Mm_pad = _round_up(Mm, T)
    Mn_pad = _round_up(Mn, T)
    n_m = Mm_pad // T
    n_n = Mn_pad // T
    n_cores = 2                               # v7x: one row per TensorCore
    n_inner = pl.cdiv(max(n_m, n_n), n_cores)

    def pad_to(x, total):
        if x.shape[-1] == total:
            return x
        return jnp.pad(x, ((0, 0), (0, total - x.shape[-1])))

    inputs = [pad_to(mnfld_pred, Mm_pad), pad_to(nonmnfld_grad, Mn_pad)]
    in_specs = [_stream_spec(1, T, n_m, n_inner), _stream_spec(3, T, n_n, n_inner)]
    n_scratch = 2
    if has_normals:
        inputs += [pad_to(mnfld_grad, Mm_pad), pad_to(normals, Mm_pad)]
        in_specs += [_stream_spec(3, T, n_m, n_inner),
                     _stream_spec(3, T, n_m, n_inner)]
        n_scratch = 3

    kernel = _make_loss_kernel(T, Mm, Mn, n_inner, has_normals)

    bytes_accessed = int(sum(int(x.size) * x.dtype.itemsize for x in inputs)
                         + n_cores * 128 * 4)
    flops = int(2 * Mm + 10 * Mn + (12 * Mm if has_normals else 0))
    transcendentals = int(Mn + (Mm if has_normals else 0))

    out = pl.pallas_call(
        kernel,
        out_shape=jax.ShapeDtypeStruct((n_cores, 1, 128), jnp.float32),
        grid_spec=pltpu.PrefetchScalarGridSpec(
            num_scalar_prefetch=0,
            grid=(n_cores, n_inner),
            in_specs=in_specs,
            out_specs=pl.BlockSpec((None, 1, 128), lambda c, i: (c, 0, 0)),
            scratch_shapes=[pltpu.VMEM((1, T), jnp.float32)] * n_scratch),
        compiler_params=pltpu.CompilerParams(
            dimension_semantics=("parallel", "arbitrary"),
            vmem_limit_bytes=32 * 1024 * 1024),
        cost_estimate=pl.CostEstimate(flops=flops,
                                      transcendentals=transcendentals,
                                      bytes_accessed=bytes_accessed),
    )(*inputs)

    partial = jnp.sum(out[:, 0, :], axis=0)          # sum per-core partial means
    mnfld_loss = partial[0]
    grad_loss = partial[1]
    loss = mnfld_loss + grad_lambda * grad_loss
    if has_normals:
        normals_loss = partial[2]
        loss = loss + normals_lambda * normals_loss
    else:
        normals_loss = jnp.float32(1.0)   # sentinel, matches torch.tensor([1.0])
    if has_latent:
        lat = latent.astype(jnp.float32)
        latent_loss = jnp.mean(jnp.sqrt(jnp.sum(lat * lat, axis=-1)))
        loss = loss + latent_lambda * latent_loss
    else:
        latent_loss = jnp.float32(0.0)

    return {'loss': loss, 'sdf_term': mnfld_loss, 'grad_term': grad_loss,
            'normals_term': normals_loss, 'latent_term': latent_loss}


# ------------------------------ plain-JAX glue ------------------------------

def sdf_net(params, pnts):
    """Tiny deterministic SDF MLP: (..., D) -> (..., 1)."""
    w1, b1, w2, b2 = params
    h = jnp.tanh(pnts @ w1 + b1)
    return h @ w2 + b2


def pointwise_grad(params, pnts):
    """torch.autograd.grad(pred, pnts, grad_outputs=ones)[..., -3:] equivalent."""
    g = jax.grad(lambda p: jnp.sum(sdf_net(params, p)))(pnts)
    return g[..., -3:]


def _lane_dense(x):
    """(B, N, C) -> (C, B*N) lane-dense layout for the kernel."""
    return jnp.moveaxis(x, -1, 0).reshape(x.shape[-1], -1)


def loss_igr_forward(params, mnfld_pnts, nonmnfld_pnts, latent=None, normals=None,
                     grad_lambda=0.1, normals_lambda=1.0, latent_lambda=0.001):
    mnfld_pred = sdf_net(params, mnfld_pnts)               # (B, Nm, 1)
    mnfld_grad = pointwise_grad(params, mnfld_pnts)        # (B, Nm, 3)
    nonmnfld_grad = pointwise_grad(params, nonmnfld_pnts)  # (B, Nn, 3)

    pred_l = mnfld_pred.reshape(1, -1)                     # (1, B*Nm)
    mg_l = _lane_dense(mnfld_grad)                         # (3, B*Nm)
    ng_l = _lane_dense(nonmnfld_grad)                      # (3, B*Nn)
    nrm_l = None if normals is None else _lane_dense(normals)

    return loss_igr_pallas(pred_l, ng_l, mnfld_grad=mg_l, normals=nrm_l,
                           latent=latent, grad_lambda=grad_lambda,
                           normals_lambda=normals_lambda,
                           latent_lambda=latent_lambda)


# ------------------------------- reference ----------------------------------

def loss_igr_reference(mnfld_pred, mnfld_grad, nonmnfld_grad, normals, latent,
                       grad_lambda=0.1, normals_lambda=1.0, latent_lambda=0.001):
    mnfld_loss = jnp.mean(jnp.abs(mnfld_pred))
    grad_loss = jnp.mean((jnp.linalg.norm(nonmnfld_grad, axis=-1) - 1.0) ** 2)
    loss = mnfld_loss + grad_lambda * grad_loss
    normals_loss = jnp.mean(jnp.linalg.norm(jnp.abs(mnfld_grad - normals), axis=-1))
    loss = loss + normals_lambda * normals_loss
    latent_loss = jnp.mean(jnp.linalg.norm(latent, axis=-1))
    loss = loss + latent_lambda * latent_loss
    return jnp.stack([loss, mnfld_loss, grad_loss, normals_loss, latent_loss])


# --------------------------------- main --------------------------------------

if __name__ == "__main__":
    key = jax.random.PRNGKey(0)
    B, Nm, Nn, D, H, L = 2, 8, 16, 5, 32, 8   # points carry D=5 dims; last 3 are xyz

    ks = jax.random.split(key, 8)
    params = (jax.random.normal(ks[0], (D, H), jnp.float32) * 0.3,
              jnp.zeros((H,), jnp.float32),
              jax.random.normal(ks[1], (H, 1), jnp.float32) * 0.3,
              jnp.zeros((1,), jnp.float32))

    mnfld_pnts = jax.random.normal(ks[2], (B, Nm, D), jnp.float32)
    nonmnfld_pnts = jax.random.normal(ks[3], (B, Nn, D), jnp.float32)
    normals = jax.random.normal(ks[4], (B, Nm, 3), jnp.float32)
    normals = normals / jnp.linalg.norm(normals, axis=-1, keepdims=True)
    latent = jax.random.normal(ks[5], (B, L), jnp.float32)

    result = loss_igr_forward(params, mnfld_pnts, nonmnfld_pnts,
                              latent=latent, normals=normals)
    jax.block_until_ready(result['loss'])

    # cross-check against a pure-JAX reference
    mnfld_pred = sdf_net(params, mnfld_pnts).reshape(B * Nm, 1)
    mg = pointwise_grad(params, mnfld_pnts).reshape(B * Nm, 3)
    ng = pointwise_grad(params, nonmnfld_pnts).reshape(B * Nn, 3)
    ref = loss_igr_reference(mnfld_pred, mg, ng, normals.reshape(B * Nm, 3), latent)
    got = jnp.stack([result['loss'], result['sdf_term'], result['grad_term'],
                     result['normals_term'], result['latent_term']])
    assert jnp.allclose(got, ref, rtol=1e-5, atol=1e-5), (got, ref)

    # no-normals / no-latent variant (exercises the pallas_call without dummy DMAs)
    r2 = loss_igr_forward(params, mnfld_pnts, nonmnfld_pnts)
    jax.block_until_ready(r2['loss'])
    ref2 = (jnp.mean(jnp.abs(mnfld_pred))
            + 0.1 * jnp.mean((jnp.linalg.norm(ng, axis=-1) - 1.0) ** 2))
    assert jnp.allclose(r2['loss'], ref2, rtol=1e-5, atol=1e-5), (r2['loss'], ref2)

    print("KERNEL_OK")
</pallas_src>

<mosaic_0001>
module attributes {stable_mosaic.version = 11 : i64} {
  func.func @kernel(%arg0: i32, %arg1: i32, %arg2: memref<1x128xf32, #tpu.memory_space<vmem>>, %arg3: memref<3x128xf32, #tpu.memory_space<vmem>>, %arg4: memref<3x128xf32, #tpu.memory_space<vmem>>, %arg5: memref<3x128xf32, #tpu.memory_space<vmem>>, %arg6: memref<1x1x128xf32, #tpu.memory_space<vmem>>, %arg7: memref<1x128xf32, #tpu.memory_space<vmem>>, %arg8: memref<1x128xf32, #tpu.memory_space<vmem>>, %arg9: memref<1x128xf32, #tpu.memory_space<vmem>>) attributes {dimension_semantics = [#tpu.dimension_semantics<parallel>, #tpu.dimension_semantics<arbitrary>], iteration_bounds = array<i64: 2, 1>, scalar_prefetch = 0 : i64, scratch_operands = 3 : i64, tpu.core_type = #tpu.core_type<tc>, window_params = [{transform_indices = @transform_0, window_bounds = array<i64: 1, 128>}, {transform_indices = @transform_1, window_bounds = array<i64: 3, 128>}, {transform_indices = @transform_2, window_bounds = array<i64: 3, 128>}, {transform_indices = @transform_3, window_bounds = array<i64: 3, 128>}, {transform_indices = @transform_4, window_bounds = array<i64: 1, 1, 128>}]} {
    %c0_i32 = arith.constant 0 : i32
    %0 = arith.cmpi eq, %arg1, %c0_i32 : i32
    %1 = arith.extui %0 : i1 to i32
    %c0_i32_0 = arith.constant 0 : i32
    %2 = arith.cmpi ne, %1, %c0_i32_0 : i32
    scf.if %2 {
      %cst_35 = arith.constant 0.000000e+00 : f32
      %60 = vector.broadcast %cst_35 : f32 to vector<1x128xf32>
      %c0_36 = arith.constant 0 : index
      %c0_37 = arith.constant 0 : index
      %61 = vector.load %arg7[%c0_36, %c0_37] : memref<1x128xf32, #tpu.memory_space<vmem>>, vector<1x128xf32>
      tpu.vector_store %arg7[%c0_36, %c0_37], %60 {strides = array<i32>} : memref<1x128xf32, #tpu.memory_space<vmem>>, vector<1x128xf32>,
      %cst_38 = arith.constant 0.000000e+00 : f32
      %62 = vector.broadcast %cst_38 : f32 to vector<1x128xf32>
      %c0_39 = arith.constant 0 : index
      %c0_40 = arith.constant 0 : index
      %63 = vector.load %arg8[%c0_39, %c0_40] : memref<1x128xf32, #tpu.memory_space<vmem>>, vector<1x128xf32>
      tpu.vector_store %arg8[%c0_39, %c0_40], %62 {strides = array<i32>} : memref<1x128xf32, #tpu.memory_space<vmem>>, vector<1x128xf32>,
      %cst_41 = arith.constant 0.000000e+00 : f32
      %64 = vector.broadcast %cst_41 : f32 to vector<1x128xf32>
      %c0_42 = arith.constant 0 : index
      %c0_43 = arith.constant 0 : index
      %65 = vector.load %arg9[%c0_42, %c0_43] : memref<1x128xf32, #tpu.memory_space<vmem>>, vector<1x128xf32>
      tpu.vector_store %arg9[%c0_42, %c0_43], %64 {strides = array<i32>} : memref<1x128xf32, #tpu.memory_space<vmem>>, vector<1x128xf32>,
    } else {
    }
    %c1_i32 = arith.constant 1 : i32
    %3 = arith.muli %arg0, %c1_i32 : i32
    %4 = arith.addi %3, %arg1 : i32
    %5 = tpu.iota {dimensions = array<i32: 1>} : vector<1x128xi32>
    %c128_i32 = arith.constant 128 : i32
    %6 = arith.muli %4, %c128_i32 : i32
    %7 = vector.broadcast %6 : i32 to vector<1x128xi32>
    %8 = arith.addi %7, %5 : vector<1x128xi32>
    %c16_i32 = arith.constant 16 : i32
    %9 = vector.broadcast %c16_i32 : i32 to vector<1x128xi32>
    %10 = arith.cmpi slt, %8, %9 : vector<1x128xi32>
    %c32_i32 = arith.constant 32 : i32
    %11 = vector.broadcast %c32_i32 : i32 to vector<1x128xi32>
    %12 = arith.cmpi slt, %8, %11 : vector<1x128xi32>
    %c0 = arith.constant 0 : index
    %c0_1 = arith.constant 0 : index
    %13 = vector.load %arg2[%c0, %c0_1] : memref<1x128xf32, #tpu.memory_space<vmem>>, vector<1x128xf32>
    %c0_2 = arith.constant 0 : index
    %c0_3 = arith.constant 0 : index
    %14 = vector.load %arg7[%c0_2, %c0_3] : memref<1x128xf32, #tpu.memory_space<vmem>>, vector<1x128xf32>
    %15 = math.absf %13 : vector<1x128xf32>
    %cst = arith.constant 0.000000e+00 : f32
    %16 = vector.broadcast %cst : f32 to vector<1x128xf32>
    %17 = arith.select %10, %15, %16 : vector<1x128xi1>, vector<1x128xf32>
    %18 = arith.addf %14, %17 : vector<1x128xf32>
    %c0_4 = arith.constant 0 : index
    %c0_5 = arith.constant 0 : index
    %19 = vector.load %arg7[%c0_4, %c0_5] : memref<1x128xf32, #tpu.memory_space<vmem>>, vector<1x128xf32>
    tpu.vector_store %arg7[%c0_4, %c0_5], %18 {strides = array<i32>} : memref<1x128xf32, #tpu.memory_space<vmem>>, vector<1x128xf32>,
    %c0_6 = arith.constant 0 : index
    %c0_7 = arith.constant 0 : index
    %20 = vector.load %arg3[%c0_6, %c0_7] : memref<3x128xf32, #tpu.memory_space<vmem>>, vector<1x128xf32>
    %c1 = arith.constant 1 : index
    %c0_8 = arith.constant 0 : index
    %21 = vector.load %arg3[%c1, %c0_8] : memref<3x128xf32, #tpu.memory_space<vmem>>, vector<1x128xf32>
    %c2 = arith.constant 2 : index
    %c0_9 = arith.constant 0 : index
    %22 = vector.load %arg3[%c2, %c0_9] : memref<3x128xf32, #tpu.memory_space<vmem>>, vector<1x128xf32>
    %23 = arith.mulf %20, %20 : vector<1x128xf32>
    %24 = arith.mulf %21, %21 : vector<1x128xf32>
    %25 = arith.addf %23, %24 : vector<1x128xf32>
    %26 = arith.mulf %22, %22 : vector<1x128xf32>
    %27 = arith.addf %25, %26 : vector<1x128xf32>
    %28 = math.sqrt %27 : vector<1x128xf32>
    %c0_10 = arith.constant 0 : index
    %c0_11 = arith.constant 0 : index
    %29 = vector.load %arg8[%c0_10, %c0_11] : memref<1x128xf32, #tpu.memory_space<vmem>>, vector<1x128xf32>
    %cst_12 = arith.constant 1.000000e+00 : f32
    %30 = vector.broadcast %cst_12 : f32 to vector<1x128xf32>
    %31 = arith.subf %28, %30 : vector<1x128xf32>
    %32 = arith.mulf %31, %31 : vector<1x128xf32>
    %cst_13 = arith.constant 0.000000e+00 : f32
    %33 = vector.broadcast %cst_13 : f32 to vector<1x128xf32>
    %34 = arith.select %12, %32, %33 : vector<1x128xi1>, vector<1x128xf32>
    %35 = arith.addf %29, %34 : vector<1x128xf32>
    %c0_14 = arith.constant 0 : index
    %c0_15 = arith.constant 0 : index
    %36 = vector.load %arg8[%c0_14, %c0_15] : memref<1x128xf32, #tpu.memory_space<vmem>>, vector<1x128xf32>
    tpu.vector_store %arg8[%c0_14, %c0_15], %35 {strides = array<i32>} : memref<1x128xf32, #tpu.memory_space<vmem>>, vector<1x128xf32>,
    %c0_16 = arith.constant 0 : index
    %c0_17 = arith.constant 0 : index
    %37 = vector.load %arg4[%c0_16, %c0_17] : memref<3x128xf32, #tpu.memory_space<vmem>>, vector<1x128xf32>
    %c0_18 = arith.constant 0 : index
    %c0_19 = arith.constant 0 : index
    %38 = vector.load %arg5[%c0_18, %c0_19] : memref<3x128xf32, #tpu.memory_space<vmem>>, vector<1x128xf32>
    %39 = arith.subf %37, %38 : vector<1x128xf32>
    %c1_20 = arith.constant 1 : index
    %c0_21 = arith.constant 0 : index
    %40 = vector.load %arg4[%c1_20, %c0_21] : memref<3x128xf32, #tpu.memory_space<vmem>>, vector<1x128xf32>
    %c1_22 = arith.constant 1 : index
    %c0_23 = arith.constant 0 : index
    %41 = vector.load %arg5[%c1_22, %c0_23] : memref<3x128xf32, #tpu.memory_space<vmem>>, vector<1x128xf32>
    %42 = arith.subf %40, %41 : vector<1x128xf32>
    %c2_24 = arith.constant 2 : index
    %c0_25 = arith.constant 0 : index
    %43 = vector.load %arg4[%c2_24, %c0_25] : memref<3x128xf32, #tpu.memory_space<vmem>>, vector<1x128xf32>
    %c2_26 = arith.constant 2 : index
    %c0_27 = arith.constant 0 : index
    %44 = vector.load %arg5[%c2_26, %c0_27] : memref<3x128xf32, #tpu.memory_space<vmem>>, vector<1x128xf32>
    %45 = arith.subf %43, %44 : vector<1x128xf32>
    %46 = arith.mulf %39, %39 : vector<1x128xf32>
    %47 = arith.mulf %42, %42 : vector<1x128xf32>
    %48 = arith.addf %46, %47 : vector<1x128xf32>
    %49 = arith.mulf %45, %45 : vector<1x128xf32>
    %50 = arith.addf %48, %49 : vector<1x128xf32>
    %51 = math.sqrt %50 : vector<1x128xf32>
    %c0_28 = arith.constant 0 : index
    %c0_29 = arith.constant 0 : index
    %52 = vector.load %arg9[%c0_28, %c0_29] : memref<1x128xf32, #tpu.memory_space<vmem>>, vector<1x128xf32>
    %cst_30 = arith.constant 0.000000e+00 : f32
    %53 = vector.broadcast %cst_30 : f32 to vector<1x128xf32>
    %54 = arith.select %10, %51, %53 : vector<1x128xi1>, vector<1x128xf32>
    %55 = arith.addf %52, %54 : vector<1x128xf32>
    %c0_31 = arith.constant 0 : index
    %c0_32 = arith.constant 0 : index
    %56 = vector.load %arg9[%c0_31, %c0_32] : memref<1x128xf32, #tpu.memory_space<vmem>>, vector<1x128xf32>
    tpu.vector_store %arg9[%c0_31, %c0_32], %55 {strides = array<i32>} : memref<1x128xf32, #tpu.memory_space<vmem>>, vector<1x128xf32>,
    %c0_i32_33 = arith.constant 0 : i32
    %57 = arith.cmpi eq, %arg1, %c0_i32_33 : i32
    %58 = arith.extui %57 : i1 to i32
    %c0_i32_34 = arith.constant 0 : i32
    %59 = arith.cmpi ne, %58, %c0_i32_34 : i32
    scf.if %59 {
      %c0_35 = arith.constant 0 : index
      %c0_36 = arith.constant 0 : index
      %60 = vector.load %arg7[%c0_35, %c0_36] : memref<1x128xf32, #tpu.memory_space<vmem>>, vector<1x128xf32>
      %61 = vector.shape_cast %60 : vector<1x128xf32> to vector<1x1x128xf32>
      %cst_37 = arith.constant dense<0.000000e+00> : vector<1xf32>
      %62 = vector.multi_reduction <add>, %61, %cst_37 [1, 2] : vector<1x1x128xf32> to vector<1xf32>
      %63 = vector.shape_cast %62 : vector<1xf32> to vector<1x1x1xf32>
      %64 = vector.extract %63[0, 0, 0] : f32 from vector<1x1x1xf32>
      %cst_38 = arith.constant 6.250000e-02 : f32
      %65 = arith.mulf %64, %cst_38 : f32
      %c0_39 = arith.constant 0 : index
      %c0_40 = arith.constant 0 : index
      %66 = vector.load %arg8[%c0_39, %c0_40] : memref<1x128xf32, #tpu.memory_space<vmem>>, vector<1x128xf32>
      %67 = vector.shape_cast %66 : vector<1x128xf32> to vector<1x1x128xf32>
      %cst_41 = arith.constant dense<0.000000e+00> : vector<1xf32>
      %68 = vector.multi_reduction <add>, %67, %cst_41 [1, 2] : vector<1x1x128xf32> to vector<1xf32>
      %69 = vector.shape_cast %68 : vector<1xf32> to vector<1x1x1xf32>
      %70 = vector.extract %69[0, 0, 0] : f32 from vector<1x1x1xf32>
      %cst_42 = arith.constant 3.125000e-02 : f32
      %71 = arith.mulf %70, %cst_42 : f32
      %c0_43 = arith.constant 0 : index
      %c0_44 = arith.constant 0 : index
      %72 = vector.load %arg9[%c0_43, %c0_44] : memref<1x128xf32, #tpu.memory_space<vmem>>, vector<1x128xf32>
      %73 = vector.shape_cast %72 : vector<1x128xf32> to vector<1x1x128xf32>
      %cst_45 = arith.constant dense<0.000000e+00> : vector<1xf32>
      %74 = vector.multi_reduction <add>, %73, %cst_45 [1, 2] : vector<1x1x128xf32> to vector<1xf32>
      %75 = vector.shape_cast %74 : vector<1xf32> to vector<1x1x1xf32>
      %76 = vector.extract %75[0, 0, 0] : f32 from vector<1x1x1xf32>
      %cst_46 = arith.constant 6.250000e-02 : f32
      %77 = arith.mulf %76, %cst_46 : f32
      %78 = tpu.iota {dimensions = array<i32: 1>} : vector<1x128xi32>
      %c0_i32_47 = arith.constant 0 : i32
      %79 = vector.broadcast %c0_i32_47 : i32 to vector<1x128xi32>
      %80 = arith.cmpi eq, %78, %79 : vector<1x128xi32>
      %81 = arith.extui %80 : vector<1x128xi1> to vector<1x128xi32>
      %82 = arith.sitofp %81 : vector<1x128xi32> to vector<1x128xf32>
      %83 = vector.broadcast %65 : f32 to vector<1x128xf32>
      %84 = arith.mulf %83, %82 : vector<1x128xf32>
      %c1_i32_48 = arith.constant 1 : i32
      %85 = vector.broadcast %c1_i32_48 : i32 to vector<1x128xi32>
      %86 = arith.cmpi eq, %78, %85 : vector<1x128xi32>
      %87 = arith.extui %86 : vector<1x128xi1> to vector<1x128xi32>
      %88 = arith.sitofp %87 : vector<1x128xi32> to vector<1x128xf32>
      %89 = vector.broadcast %71 : f32 to vector<1x128xf32>
      %90 = arith.mulf %89, %88 : vector<1x128xf32>
      %91 = arith.addf %84, %90 : vector<1x128xf32>
      %c2_i32 = arith.constant 2 : i32
      %92 = vector.broadcast %c2_i32 : i32 to vector<1x128xi32>
      %93 = arith.cmpi eq, %78, %92 : vector<1x128xi32>
      %94 = arith.extui %93 : vector<1x128xi1> to vector<1x128xi32>
      %95 = arith.sitofp %94 : vector<1x128xi32> to vector<1x128xf32>
      %96 = vector.broadcast %77 : f32 to vector<1x128xf32>
      %97 = arith.mulf %96, %95 : vector<1x128xf32>
      %98 = arith.addf %91, %97 : vector<1x128xf32>
      %c0_49 = arith.constant 0 : index
      %c0_50 = arith.constant 0 : index
      %c0_51 = arith.constant 0 : index
      %99 = vector.load %arg6[%c0_49, %c0_50, %c0_51] : memref<1x1x128xf32, #tpu.memory_space<vmem>>, vector<1x1x128xf32>
      %100 = vector.shape_cast %99 : vector<1x1x128xf32> to vector<1x128xf32>
      %101 = vector.shape_cast %98 : vector<1x128xf32> to vector<1x1x128xf32>
      tpu.vector_store %arg6[%c0_49, %c0_50, %c0_51], %101 {strides = array<i32>} : memref<1x1x128xf32, #tpu.memory_space<vmem>>, vector<1x1x128xf32>,
    } else {
    }
    return
  }
  func.func @transform_0(%arg0: i32, %arg1: i32) -> (i32, i32) {
    %c1_i32 = arith.constant 1 : i32
    %0 = arith.muli %arg0, %c1_i32 : i32
    %1 = arith.addi %0, %arg1 : i32
    %c0_i32 = arith.constant 0 : i32
    %2 = arith.minsi %1, %c0_i32 : i32
    %c0_i32_0 = arith.constant 0 : i32
    %c0_i32_1 = arith.constant 0 : i32
    return %c0_i32_0, %2 : i32, i32
  }
  func.func @transform_1(%arg0: i32, %arg1: i32) -> (i32, i32) {
    %c1_i32 = arith.constant 1 : i32
    %0 = arith.muli %arg0, %c1_i32 : i32
    %1 = arith.addi %0, %arg1 : i32
    %c0_i32 = arith.constant 0 : i32
    %2 = arith.minsi %1, %c0_i32 : i32
    %c0_i32_0 = arith.constant 0 : i32
    %c0_i32_1 = arith.constant 0 : i32
    return %c0_i32_0, %2 : i32, i32
  }
  func.func @transform_2(%arg0: i32, %arg1: i32) -> (i32, i32) {
    %c1_i32 = arith.constant 1 : i32
    %0 = arith.muli %arg0, %c1_i32 : i32
    %1 = arith.addi %0, %arg1 : i32
    %c0_i32 = arith.constant 0 : i32
    %2 = arith.minsi %1, %c0_i32 : i32
    %c0_i32_0 = arith.constant 0 : i32
    %c0_i32_1 = arith.constant 0 : i32
    return %c0_i32_0, %2 : i32, i32
  }
  func.func @transform_3(%arg0: i32, %arg1: i32) -> (i32, i32) {
    %c1_i32 = arith.constant 1 : i32
    %0 = arith.muli %arg0, %c1_i32 : i32
    %1 = arith.addi %0, %arg1 : i32
    %c0_i32 = arith.constant 0 : i32
    %2 = arith.minsi %1, %c0_i32 : i32
    %c0_i32_0 = arith.constant 0 : i32
    %c0_i32_1 = arith.constant 0 : i32
    return %c0_i32_0, %2 : i32, i32
  }
  func.func @transform_4(%arg0: i32, %arg1: i32) -> (i32, i32, i32) {
    %c0_i32 = arith.constant 0 : i32
    %c0_i32_0 = arith.constant 0 : i32
    %c0_i32_1 = arith.constant 0 : i32
    return %arg0, %c0_i32, %c0_i32_0 : i32, i32, i32
  }
}

</mosaic_0001>

<llo_original>
// kernel: tpu_custom_call.1
$region0: #{tpu_custom_call.1}
  #allocation0 [shape = 'u32[]', space=smem, size = 0x4, offset = 0x4, fixed_abs, tag = 'smem constant byte address 0x4 - core index']
  #allocation1 [shape = 'u32[144,128]{1,0:T(1,128)}', space=vmem, size = 0x12000, scoped, tag = 'internal scratch']
  #allocation2 [shape = 'f32[1,128]{1,0:T(1,128)}', space=vmem, size = 0x200, scoped, tag = 'scratch operand']
  #allocation3 [shape = 'f32[1,128]{1,0:T(1,128)}', space=vmem, size = 0x200, scoped, tag = 'scratch operand']
  #allocation4 [shape = 'f32[1,128]{1,0:T(1,128)}', space=vmem, size = 0x200, scoped, tag = 'scratch operand']
  %s0 = inlined_call_operand.hbm [shape: f32[1,128], index: 0, kind: input, shape index: {}]
  %s1 = inlined_call_operand.hbm [shape: f32[3,128], index: 1, kind: input, shape index: {}]
  %s2 = inlined_call_operand.vmem [shape: f32[3,128], index: 2, kind: input, shape index: {}]
  %s3 = inlined_call_operand.vmem [shape: f32[3,128], index: 3, kind: input, shape index: {}]
  %s4 = inlined_call_operand.hbm [shape: f32[2,1,128], index: 4, kind: output, shape index: {}]
  %s5 = sld [smem:[#allocation0]]
  $region65: #{tpu_custom_call.1} parent=0
    _
  %s7 = ssub.s32 1, %s5
  %s8 = scalar_select 0, %s7, %s5
  $region1: #{tpu_custom_call.1} parent=0
    #allocation5 [shape = 'u8[1024]{0}', space=vmem, size = 0x400, scoped, tag = 'input window, operand 0']
    #allocation6 [shape = 's32[2]{0}', space=sflag, size = 0x8, scoped, tag = 'scoped memory for tpu_custom_call.1']
    #allocation7 [shape = 's32[2]{0}', space=sflag, size = 0x8, scoped, tag = 'scoped memory for tpu_custom_call.1']
    #allocation8 [shape = 'u8[4096]{0}', space=vmem, size = 0x1000, scoped, tag = 'input window, operand 1']
    #allocation9 [shape = 's32[2]{0}', space=sflag, size = 0x8, scoped, tag = 'scoped memory for tpu_custom_call.1']
    #allocation10 [shape = 'u8[1024]{0}', space=vmem, size = 0x400, scoped, tag = 'output window, operand 0']
    %9 = vsyncpa [#allocation6], 0
    %s10 = scalar_lea.sflag [#allocation6], 1
    %11 = vsyncpa %s10, 0
    %12 = vsyncpa [#allocation9], 0
    %s13 = scalar_lea.sflag [#allocation9], 1
    %14 = vsyncpa %s13, 0
    %15 = vsyncpa [#allocation7], 0
    %s16 = scalar_lea.sflag [#allocation7], 1
    %17 = vsyncpa %s16, 0
    loop: start=0, step=1, limit=4
    $region2: #{tpu_custom_call.1} parent=1 // loop_pre_header
      _
    $region3: #{tpu_custom_call.1} parent=1 // loop_header
      %s19 = sphi 0, %s23
      %p20 = scmp.ge.s32.totalorder %s19, 4
      %s26 = sphi 0, %s38
      %s27 = sphi 0, %s34
      %s28 = sphi 0, %s26
      %s29 = sphi 0, %s27
      %s30 = sphi 0, %s28
      %s31 = sphi 0, %s29
      %s47 = sphi 0, %s49
      %s50 = sphi 0, %s47
      %s51 = sphi 0, %s50
      %s67 = sphi 0, %s51
      %s79 = sphi 0, %s81
      %s82 = sphi 0, %s79
      %s83 = sphi 0, %s82
      %s99 = sphi 0, %s83
      %s111 = sphi 0, %s113
      %s114 = sphi 0, %s111
      %s115 = sphi 0, %s114
      %s131 = sphi 0, %s115
      %s143 = sphi 0, %s145
      %s146 = sphi 0, %s143
      %s147 = sphi 0, %s146
      %s163 = sphi 0, %s147
      %s169 = sphi 0, %s171
      %s172 = sphi 0, %s169
      %s173 = sphi 0, %s172
      %s189 = sphi 0, %s173
    $region4: #{tpu_custom_call.1} parent=1 // loop_header_branch
      %22 = sbr.rel (%p20) target = $region8
    $region5: #{tpu_custom_call.1} parent=1 // loop_body
      %s24 = ssub.s32 %s19, 1
      %s25 = ssub.s32 %s19, 2
      %s32 = sadd.s32 1, %s27
      %p33 = scmp.ge.s32.totalorder %s32, 1
      %s34 = scalar_select %p33, 0, %s32
      %s35 = sadd.s32 1, %s26
      %s36 = scalar_select %p33, %s35, %s26
      %p37 = scmp.ge.s32.totalorder %s36, 2
      %s38 = scalar_select %p37, 0, %s36
      %s39 = sadd.s32 %s26, %s27
      %p40 = scmp.lt.s32.totalorder %s39, 0
      %s41 = scalar_select %p40, %s39, 0
      %s42 = sadd.s32 %s38, %s34
      %p43 = scmp.lt.s32.totalorder %s42, 0
      %s44 = scalar_select %p43, %s42, 0
      %s45 = ssub.s32 %s41, %s44
      %p46 = scmp.eq.s32.totalorder %s45, 0
      %s48 = sadd.s32 %s47, 1
      %s49 = scalar_select %p46, %s47, %s48
      %p52 = pneg %p46
      %p53 = scmp.eq.s32.totalorder %s19, 1
      %p54 = por %p52, %p53
      %p55 = scmp.ne.s32.totalorder %s47, %s50
      %p56 = scmp.eq.s32.totalorder %s19, 0
      %p57 = por %p55, %p56
      %p58 = scmp.ne.s32.totalorder %s47, %s50
      %p59 = scmp.eq.s32.totalorder %s24, 1
      %p60 = por %p58, %p59
      %p61 = scmp.ne.s32.totalorder %s50, %s51
      %p62 = scmp.eq.s32.totalorder %s24, 0
      %p63 = por %p61, %p62
      %p64 = scmp.ne.s32.totalorder %s50, %s51
      %p65 = scmp.eq.s32.totalorder %s25, 1
      %p66 = por %p64, %p65
      %p68 = scmp.ne.s32.totalorder %s51, %s67
      %p69 = scmp.eq.s32.totalorder %s25, 0
      %p70 = por %p68, %p69
      %s71 = sadd.s32 %s26, %s27
      %p72 = scmp.lt.s32.totalorder %s71, 0
      %s73 = scalar_select %p72, %s71, 0
      %s74 = sadd.s32 %s38, %s34
      %p75 = scmp.lt.s32.totalorder %s74, 0
      %s76 = scalar_select %p75, %s74, 0
      %s77 = ssub.s32 %s73, %s76
      %p78 = scmp.eq.s32.totalorder %s77, 0
      %s80 = sadd.s32 %s79, 1
      %s81 = scalar_select %p78, %s79, %s80
      %p84 = pneg %p78
      %p85 = scmp.eq.s32.totalorder %s19, 1
      %p86 = por %p84, %p85
      %p87 = scmp.ne.s32.totalorder %s79, %s82
      %p88 = scmp.eq.s32.totalorder %s19, 0
      %p89 = por %p87, %p88
      %p90 = scmp.ne.s32.totalorder %s79, %s82
      %p91 = scmp.eq.s32.totalorder %s24, 1
      %p92 = por %p90, %p91
      %p93 = scmp.ne.s32.totalorder %s82, %s83
      %p94 = scmp.eq.s32.totalorder %s24, 0
      %p95 = por %p93, %p94
      %p96 = scmp.ne.s32.totalorder %s82, %s83
      %p97 = scmp.eq.s32.totalorder %s25, 1
      %p98 = por %p96, %p97
      %p100 = scmp.ne.s32.totalorder %s83, %s99
      %p101 = scmp.eq.s32.totalorder %s25, 0
      %p102 = por %p100, %p101
      %s103 = sadd.s32 %s26, %s27
      %p104 = scmp.lt.s32.totalorder %s103, 0
      %s105 = scalar_select %p104, %s103, 0
      %s106 = sadd.s32 %s38, %s34
      %p107 = scmp.lt.s32.totalorder %s106, 0
      %s108 = scalar_select %p107, %s106, 0
      %s109 = ssub.s32 %s105, %s108
      %p110 = scmp.eq.s32.totalorder %s109, 0
      %s112 = sadd.s32 %s111, 1
      %s113 = scalar_select %p110, %s111, %s112
      %p116 = pneg %p110
      %p117 = scmp.eq.s32.totalorder %s19, 1
      %p118 = por %p116, %p117
      %p119 = scmp.ne.s32.totalorder %s111, %s114
      %p120 = scmp.eq.s32.totalorder %s19, 0
      %p121 = por %p119, %p120
      %p122 = scmp.ne.s32.totalorder %s111, %s114
      %p123 = scmp.eq.s32.totalorder %s24, 1
      %p124 = por %p122, %p123
      %p125 = scmp.ne.s32.totalorder %s114, %s115
      %p126 = scmp.eq.s32.totalorder %s24, 0
      %p127 = por %p125, %p126
      %p128 = scmp.ne.s32.totalorder %s114, %s115
      %p129 = scmp.eq.s32.totalorder %s25, 1
      %p130 = por %p128, %p129
      %p132 = scmp.ne.s32.totalorder %s115, %s131
      %p133 = scmp.eq.s32.totalorder %s25, 0
      %p134 = por %p132, %p133
      %s135 = sadd.s32 %s26, %s27
      %p136 = scmp.lt.s32.totalorder %s135, 0
      %s137 = scalar_select %p136, %s135, 0
      %s138 = sadd.s32 %s38, %s34
      %p139 = scmp.lt.s32.totalorder %s138, 0
      %s140 = scalar_select %p139, %s138, 0
      %s141 = ssub.s32 %s137, %s140
      %p142 = scmp.eq.s32.totalorder %s141, 0
      %s144 = sadd.s32 %s143, 1
      %s145 = scalar_select %p142, %s143, %s144
      %p148 = pneg %p142
      %p149 = scmp.eq.s32.totalorder %s19, 1
      %p150 = por %p148, %p149
      %p151 = scmp.ne.s32.totalorder %s143, %s146
      %p152 = scmp.eq.s32.totalorder %s19, 0
      %p153 = por %p151, %p152
      %p154 = scmp.ne.s32.totalorder %s143, %s146
      %p155 = scmp.eq.s32.totalorder %s24, 1
      %p156 = por %p154, %p155
      %p157 = scmp.ne.s32.totalorder %s146, %s147
      %p158 = scmp.eq.s32.totalorder %s24, 0
      %p159 = por %p157, %p158
      %p160 = scmp.ne.s32.totalorder %s146, %s147
      %p161 = scmp.eq.s32.totalorder %s25, 1
      %p162 = por %p160, %p161
      %p164 = scmp.ne.s32.totalorder %s147, %s163
      %p165 = scmp.eq.s32.totalorder %s25, 0
      %p166 = por %p164, %p165
      %s167 = ssub.s32 %s26, %s38
      %p168 = scmp.eq.s32.totalorder %s167, 0
      %s170 = sadd.s32 %s169, 1
      %s171 = scalar_select %p168, %s169, %s170
      %p174 = pneg %p168
      %p175 = scmp.eq.s32.totalorder %s19, 1
      %p176 = por %p174, %p175
      %p177 = scmp.ne.s32.totalorder %s169, %s172
      %p178 = scmp.eq.s32.totalorder %s19, 0
      %p179 = por %p177, %p178
      %p180 = scmp.ne.s32.totalorder %s169, %s172
      %p181 = scmp.eq.s32.totalorder %s24, 1
      %p182 = por %p180, %p181
      %p183 = scmp.ne.s32.totalorder %s172, %s173
      %p184 = scmp.eq.s32.totalorder %s24, 0
      %p185 = por %p183, %p184
      %p186 = scmp.ne.s32.totalorder %s172, %s173
      %p187 = scmp.eq.s32.totalorder %s25, 1
      %p188 = por %p186, %p187
      %p190 = scmp.ne.s32.totalorder %s173, %s189
      %p191 = scmp.eq.s32.totalorder %s25, 0
      %p192 = por %p190, %p191
      %p193 = scmp.le.s32.totalorder 1, %s19
      %p194 = scmp.lt.s32.totalorder %s19, 3
      %p195 = pnand %p193, %p194
      %p196 = pneg %p195
      // Predicated region
      $region9: #{tpu_custom_call.1} parent=5 // pred_check
        _
      $region10: #{tpu_custom_call.1} parent=5 // pred_check_branch
        %198 = sbr.rel (%p195) target = $region12
      $region11: #{tpu_custom_call.1} parent=5 // pred_region
        %s199 = ssub.s32 %s19, 1
      $region12: #{tpu_custom_call.1} parent=5 // pred_fallthru
        _
      %p200 = scmp.lt.s32.totalorder %s19, 2
      // Predicated region
      $region13: #{tpu_custom_call.1} parent=5 // pred_check
        %p201 = pneg %p200
      $region14: #{tpu_custom_call.1} parent=5 // pred_check_branch
        %203 = sbr.rel (%p201) target = $region16
      $region15: #{tpu_custom_call.1} parent=5 // pred_region
        // Predicated region
        $region17: #{tpu_custom_call.1} parent=15 // pred_check
          %p204 = pneg %p57
        $region18: #{tpu_custom_call.1} parent=15 // pred_check_branch
          %206 = sbr.rel (%p204) target = $region20
        $region19: #{tpu_custom_call.1} parent=15 // pred_region
          %s207 = sand.u32 %s47, 1
          %s208 = scalar_lea.sflag [#allocation6], %s207
          %s209 = sand.u32 %s47, 1
          %s210 = scalar_lea.vmem [#allocation5], %s209
          %s211 = sadd.s32 %s26, %s27
          %p212 = scmp.lt.s32.totalorder %s211, 0
          %s213 = scalar_select %p212, %s211, 0
          %s215 = ssub.s32 16, 16
          %216 = vsyncadd %s208, %s215
          %s217 = smul.addr %s213, 16
          %s218 = scalar_lea.hbm %s0, %s217
          %s220 = sshll.u32 %s210, 4
          %s221 = int_to_ptr.vmem [resolvable:$true] %s220
          %223 = dma.hbm_to_vmem [thread:$0]  %s218, 16, %s221, %s208
        $region20: #{tpu_custom_call.1} parent=15 // pred_fallthru
          _
        // Predicated region
        $region21: #{tpu_custom_call.1} parent=15 // pred_check
          %p224 = pneg %p89
        $region22: #{tpu_custom_call.1} parent=15 // pred_check_branch
          %226 = sbr.rel (%p224) target = $region24
        $region23: #{tpu_custom_call.1} parent=15 // pred_region
          %s227 = sand.u32 %s79, 1
          %s228 = scalar_lea.sflag [#allocation9], %s227
          %s229 = sand.u32 %s79, 1
          %s230 = smul.addr %s229, 4
          %s231 = scalar_lea.vmem [#allocation8], %s230
          %s232 = sadd.s32 %s26, %s27
          %p233 = scmp.lt.s32.totalorder %s232, 0
          %s234 = scalar_select %p233, %s232, 0
          %s236 = ssub.s32 64, 64
          %237 = vsyncadd %s228, %s236
          %s238 = smul.addr %s234, 64
          %s239 = scalar_lea.hbm %s1, %s238
          %s241 = sshll.u32 %s231, 4
          %s242 = int_to_ptr.vmem [resolvable:$true] %s241
          %244 = dma.hbm_to_vmem [thread:$0]  %s239, 64, %s242, %s228
        $region24: #{tpu_custom_call.1} parent=15 // pred_fallthru
          _
        // Predicated region
        $region25: #{tpu_custom_call.1} parent=15 // pred_check
          %p245 = pneg %p121
        $region26: #{tpu_custom_call.1} parent=15 // pred_check_branch
          %247 = sbr.rel (%p245) target = $region28
        $region27: #{tpu_custom_call.1} parent=15 // pred_region
          %s248 = sadd.s32 %s26, %s27
          %p249 = scmp.lt.s32.totalorder %s248, 0
          %s250 = scalar_select %p249, %s248, 0
          %p251 = scmp.lt.s32.totalorder %s250, 0
          %s252 = scalar_select %p251, %s250, 0
          %s253 = smul.addr %s252, 4
          %s254 = scalar_lea.vmem %s2, %s253
          %s255 = sadd.s32 %s26, %s27
          %p256 = scmp.lt.s32.totalorder %s255, 0
          %s257 = scalar_select %p256, %s255, 0
        $region28: #{tpu_custom_call.1} parent=15 // pred_fallthru
          _
        // Predicated region
        $region29: #{tpu_custom_call.1} parent=15 // pred_check
          %p258 = pneg %p153
        $region30: #{tpu_custom_call.1} parent=15 // pred_check_branch
          %260 = sbr.rel (%p258) target = $region32
        $region31: #{tpu_custom_call.1} parent=15 // pred_region
          %s261 = sadd.s32 %s26, %s27
          %p262 = scmp.lt.s32.totalorder %s261, 0
          %s263 = scalar_select %p262, %s261, 0
          %p264 = scmp.lt.s32.totalorder %s263, 0
          %s265 = scalar_select %p264, %s263, 0
          %s266 = smul.addr %s265, 4
          %s267 = scalar_lea.vmem %s3, %s266
          %s268 = sadd.s32 %s26, %s27
          %p269 = scmp.lt.s32.totalorder %s268, 0
          %s270 = scalar_select %p269, %s268, 0
        $region32: #{tpu_custom_call.1} parent=15 // pred_fallthru
          _
      $region16: #{tpu_custom_call.1} parent=5 // pred_fallthru
        _
      %p271 = scmp.le.s32.totalorder 1, %s19
      %p272 = scmp.lt.s32.totalorder %s19, 3
      %p273 = pnand %p271, %p272
      %p274 = pneg %p273
      // Predicated region
      $region33: #{tpu_custom_call.1} parent=5 // pred_check
        _
      $region34: #{tpu_custom_call.1} parent=5 // pred_check_branch
        %276 = sbr.rel (%p273) target = $region36
      $region35: #{tpu_custom_call.1} parent=5 // pred_region
        %s277 = ssub.s32 %s19, 1
        %s278 = sand.u32 %s50, 1
        %s279 = scalar_lea.sflag [#allocation6], %s278
        %s280 = sand.u32 %s50, 1
        %s281 = scalar_lea.vmem [#allocation5], %s280
        // Predicated region
        $region37: #{tpu_custom_call.1} parent=35 // pred_check
          %p282 = pneg %p63
        $region38: #{tpu_custom_call.1} parent=35 // pred_check_branch
          %284 = sbr.rel (%p282) target = $region40
        $region39: #{tpu_custom_call.1} parent=35 // pred_region
          %285 = dma.done %s279, 16
        $region40: #{tpu_custom_call.1} parent=35 // pred_fallthru
          _
        %s286 = sand.u32 %s82, 1
        %s287 = scalar_lea.sflag [#allocation9], %s286
        %s288 = sand.u32 %s82, 1
        %s289 = smul.addr %s288, 4
        %s290 = scalar_lea.vmem [#allocation8], %s289
        // Predicated region
        $region41: #{tpu_custom_call.1} parent=35 // pred_check
          %p291 = pneg %p95
        $region42: #{tpu_custom_call.1} parent=35 // pred_check_branch
          %293 = sbr.rel (%p291) target = $region44
        $region43: #{tpu_custom_call.1} parent=35 // pred_region
          %294 = dma.done %s287, 64
        $region44: #{tpu_custom_call.1} parent=35 // pred_fallthru
          _
        %s295 = sand.u32 %s50, 1
        %s296 = scalar_lea.sflag [#allocation6], %s295
        %s297 = sand.u32 %s50, 1
        %s298 = scalar_lea.vmem [#allocation5], %s297
        %p299 = pneg %p63
        %p300 = pneg %p60
        %s301 = sand.u32 %s82, 1
        %s302 = scalar_lea.sflag [#allocation9], %s301
        %s303 = sand.u32 %s82, 1
        %s304 = smul.addr %s303, 4
        %s305 = scalar_lea.vmem [#allocation8], %s304
        %p306 = pneg %p95
        %p307 = pneg %p92
        %s308 = sadd.s32 %s28, %s29
        %p309 = scmp.lt.s32.totalorder %s308, 0
        %s310 = scalar_select %p309, %s308, 0
        %p311 = scmp.lt.s32.totalorder %s310, 0
        %s312 = scalar_select %p311, %s310, 0
        %s313 = smul.addr %s312, 4
        %s314 = scalar_lea.vmem %s2, %s313
        %p315 = pneg %p127
        %p316 = pneg %p124
        %s317 = sadd.s32 %s28, %s29
        %p318 = scmp.lt.s32.totalorder %s317, 0
        %s319 = scalar_select %p318, %s317, 0
        %p320 = scmp.lt.s32.totalorder %s319, 0
        %s321 = scalar_select %p320, %s319, 0
        %s322 = smul.addr %s321, 4
        %s323 = scalar_lea.vmem %s3, %s322
        %p324 = pneg %p159
        %p325 = pneg %p156
        %p326 = pneg %p185
        %p327 = pneg %p182
        %s328 = sand.u32 %s172, 1
        %s329 = scalar_lea.sflag [#allocation7], %s328
        %s330 = sand.u32 %s172, 1
        %s331 = scalar_lea.vmem [#allocation10], %s330
        %s332 = sadd.s32 %s28, %s29
        %p333 = scmp.lt.s32.totalorder %s332, 0
        %s334 = scalar_select %p333, %s332, 0
        %s335 = sadd.s32 %s28, %s29
        %p336 = scmp.lt.s32.totalorder %s335, 0
        %s337 = scalar_select %p336, %s335, 0
        %s338 = sadd.s32 %s28, %s29
        %p339 = scmp.lt.s32.totalorder %s338, 0
        %s340 = scalar_select %p339, %s338, 0
        %p341 = scmp.lt.s32.totalorder %s340, 0
        %s342 = scalar_select %p341, %s340, 0
        %s343 = smul.addr %s342, 4
        %s344 = scalar_lea.vmem %s2, %s343
        %s345 = sadd.s32 %s28, %s29
        %p346 = scmp.lt.s32.totalorder %s345, 0
        %s347 = scalar_select %p346, %s345, 0
        %s348 = sadd.s32 %s28, %s29
        %p349 = scmp.lt.s32.totalorder %s348, 0
        %s350 = scalar_select %p349, %s348, 0
        %p351 = scmp.lt.s32.totalorder %s350, 0
        %s352 = scalar_select %p351, %s350, 0
        %s353 = smul.addr %s352, 4
        %s354 = scalar_lea.vmem %s3, %s353
        %s355 = sadd.s32 %s28, %s29
        %p356 = scmp.lt.s32.totalorder %s355, 0
        %s357 = scalar_select %p356, %s355, 0
        %p358 = scmp.eq.s32.totalorder %s29, 0
        // Predicated region
        $region45: #{tpu_custom_call.1} parent=35 // pred_check
          %p359 = pneg %p358
        $region46: #{tpu_custom_call.1} parent=35 // pred_check_branch
          %361 = sbr.rel (%p359) target = $region48
        $region47: #{tpu_custom_call.1} parent=35 // pred_region
          %362 = vst [vmem:[#allocation2] sm:$0x1] 0.0
          %363 = vst [vmem:[#allocation3] sm:$0x1] 0.0
          %364 = vst [vmem:[#allocation4] sm:$0x1] 0.0
        $region48: #{tpu_custom_call.1} parent=35 // pred_fallthru
          _
        %s365 = sadd.s32 %s28, %s29
        %v366 = vlaneseq
        %v367 = vand.u32 %v366, 127
        %s368 = smul.u32 %s365, 128
        %v369 = vstv %s368
        %v370 = vadd.s32 %v369, %v367
        %vm371 = vcmp.lt.s32.totalorder %v370, 16
        %vm372 = vcmp.lt.s32.totalorder %v370, 32
        %v373 = vld [vmem:[%s281] sm:$0x1]
        %v374 = vld [vmem:[#allocation2] sm:$0x1]
        %v375 = vand.u32 2147483647, %v373
        %v376 = vsel %vm371, %v375, 0.0
        %v377 = vadd.f32 %v374, %v376
        %378 = vst [vmem:[#allocation2] sm:$0x1] %v377
        %v379 = vld [vmem:[%s290] sm:$0x1]
        %v380 = vld [vmem:[%s290 + $0x1] sm:$0x1]
        %v381 = vld [vmem:[%s290 + $0x2] sm:$0x1]
        %v382 = vmul.f32 %v379, %v379
        %v383 = vmul.f32 %v380, %v380
        %v384 = vadd.f32 %v382, %v383
        %v385 = vmul.f32 %v381, %v381
        %v386 = vadd.f32 %v384, %v385
        %v387 = vrsqrt.pop %v386
        %v388 = vmul.f32 %v386, %v387
        %vm389 = vcmp.eq.f32.partialorder %v386, inf
        %v390 = vsel %vm389, %v386, %v388
        %vm391 = vcmp.eq.f32.partialorder %v386, 0.0
        %v392 = vand.u32 %v386, 2147483648
        %v393 = vsel %vm391, %v392, %v390
        %v394 = vld [vmem:[#allocation3] sm:$0x1]
        %v395 = vsub.f32 %v393, 1.0
        %v396 = vmul.f32 %v395, %v395
        %v397 = vsel %vm372, %v396, 0.0
        %v398 = vadd.f32 %v394, %v397
        %399 = vst [vmem:[#allocation3] sm:$0x1] %v398
        %v400 = vld [vmem:[%s344] sm:$0x1]
        %v401 = vld [vmem:[%s354] sm:$0x1]
        %v402 = vsub.f32 %v400, %v401
        %v403 = vld [vmem:[%s344 + $0x1] sm:$0x1]
        %v404 = vld [vmem:[%s354 + $0x1] sm:$0x1]
        %v405 = vsub.f32 %v403, %v404
        %v406 = vld [vmem:[%s344 + $0x2] sm:$0x1]
        %v407 = vld [vmem:[%s354 + $0x2] sm:$0x1]
        %v408 = vsub.f32 %v406, %v407
        %v409 = vmul.f32 %v402, %v402
        %v410 = vmul.f32 %v405, %v405
        %v411 = vadd.f32 %v409, %v410
        %v412 = vmul.f32 %v408, %v408
        %v413 = vadd.f32 %v411, %v412
        %v414 = vrsqrt.pop %v413
        %v415 = vmul.f32 %v413, %v414
        %vm416 = vcmp.eq.f32.partialorder %v413, inf
        %v417 = vsel %vm416, %v413, %v415
        %vm418 = vcmp.eq.f32.partialorder %v413, 0.0
        %v419 = vand.u32 %v413, 2147483648
        %v420 = vsel %vm418, %v419, %v417
        %v421 = vld [vmem:[#allocation4] sm:$0x1]
        %v422 = vsel %vm371, %v420, 0.0
        %v423 = vadd.f32 %v421, %v422
        %424 = vst [vmem:[#allocation4] sm:$0x1] %v423
        // Predicated region
        $region49: #{tpu_custom_call.1} parent=35 // pred_check
          %p425 = pneg %p358
        $region50: #{tpu_custom_call.1} parent=35 // pred_check_branch
          %427 = sbr.rel (%p425) target = $region52
        $region51: #{tpu_custom_call.1} parent=35 // pred_region
          %v428 = vld [vmem:[#allocation2] sm:$0x1]
          %vm429 = vcmask 1040384
          %v430 = vsel %vm429, %v428, 0.0
          %431 = vadd.xlane.f32.xlu0 %v430
          %v432 = vpop.xlane.xlu0 %431
          %v433 = vrot.slane %v432, 4
          %v434 = vadd.f32 %v432, %v433
          %v435 = vrot.slane %v434, 2
          %v436 = vadd.f32 %v434, %v435
          %v437 = vrot.slane %v436, 1
          %v438 = vadd.f32 %v436, %v437
          %s439 = vtos %v438
          %s440 = smul.f32 %s439, 0.0625
          %v441 = vld [vmem:[#allocation3] sm:$0x1]
          %v442 = vsel %vm429, %v441, 0.0
          %443 = vadd.xlane.f32.xlu0 %v442
          %v444 = vpop.xlane.xlu0 %443
          %v445 = vrot.slane %v444, 4
          %v446 = vadd.f32 %v444, %v445
          %v447 = vrot.slane %v446, 2
          %v448 = vadd.f32 %v446, %v447
          %v449 = vrot.slane %v448, 1
          %v450 = vadd.f32 %v448, %v449
          %s451 = vtos %v450
          %s452 = smul.f32 %s451, 0.03125
          %v453 = vld [vmem:[#allocation4] sm:$0x1]
          %v454 = vsel %vm429, %v453, 0.0
          %455 = vadd.xlane.f32.xlu0 %v454
          %v456 = vpop.xlane.xlu0 %455
          %v457 = vrot.slane %v456, 4
          %v458 = vadd.f32 %v456, %v457
          %v459 = vrot.slane %v458, 2
          %v460 = vadd.f32 %v458, %v459
          %v461 = vrot.slane %v460, 1
          %v462 = vadd.f32 %v460, %v461
          %s463 = vtos %v462
          %s464 = smul.f32 %s463, 0.0625
          %vm465 = vcmp.eq.s32.totalorder %v367, 0
          %v466 = vsel %vm465, 1, 0
          %v467 = vcvt.s32.f32 %v466
          %v468 = vstv %s440
          %v469 = vmul.f32 %v468, %v467
          %vm470 = vcmp.eq.s32.totalorder %v367, 1
          %v471 = vsel %vm470, 1, 0
          %v472 = vcvt.s32.f32 %v471
          %v473 = vstv %s452
          %v474 = vmul.f32 %v473, %v472
          %v475 = vadd.f32 %v469, %v474
          %vm476 = vcmp.eq.s32.totalorder %v367, 2
          %v477 = vsel %vm476, 1, 0
          %v478 = vcvt.s32.f32 %v477
          %v479 = vstv %s464
          %v480 = vmul.f32 %v479, %v478
          %v481 = vadd.f32 %v475, %v480
          %482 = vst [vmem:[%s331] sm:$0x1] %v481
        $region52: #{tpu_custom_call.1} parent=35 // pred_fallthru
          _
        %s483 = sand.u32 %s172, 1
        %s484 = scalar_lea.sflag [#allocation7], %s483
        %s485 = sand.u32 %s172, 1
        %s486 = scalar_lea.vmem [#allocation10], %s485
        // Predicated region
        $region53: #{tpu_custom_call.1} parent=35 // pred_check
          %p487 = pneg %p182
        $region54: #{tpu_custom_call.1} parent=35 // pred_check_branch
          %489 = sbr.rel (%p487) target = $region56
        $region55: #{tpu_custom_call.1} parent=35 // pred_region
          %s491 = ssub.s32 16, 16
          %492 = vsyncadd %s484, %s491
          %s493 = smul.addr %s28, 16
          %s494 = scalar_lea.hbm %s4, %s493
          %s496 = sshll.u32 %s486, 4
          %s497 = int_to_ptr.vmem [resolvable:$true] %s496
          %499 = dma.vmem_to_hbm [thread:$0]  %s497, 16, %s494, %s484
        $region56: #{tpu_custom_call.1} parent=35 // pred_fallthru
          _
      $region36: #{tpu_custom_call.1} parent=5 // pred_fallthru
        _
      %p500 = scmp.le.s32.totalorder 2, %s19
      // Predicated region
      $region57: #{tpu_custom_call.1} parent=5 // pred_check
        %p501 = pneg %p500
      $region58: #{tpu_custom_call.1} parent=5 // pred_check_branch
        %503 = sbr.rel (%p501) target = $region60
      $region59: #{tpu_custom_call.1} parent=5 // pred_region
        %s504 = ssub.s32 %s19, 2
        // Predicated region
        $region61: #{tpu_custom_call.1} parent=59 // pred_check
          %p505 = pneg %p188
        $region62: #{tpu_custom_call.1} parent=59 // pred_check_branch
          %507 = sbr.rel (%p505) target = $region64
        $region63: #{tpu_custom_call.1} parent=59 // pred_region
          %s508 = sand.u32 %s173, 1
          %s509 = scalar_lea.sflag [#allocation7], %s508
          %s510 = sand.u32 %s173, 1
          %s511 = scalar_lea.vmem [#allocation10], %s510
          %512 = dma.done %s509, 16
        $region64: #{tpu_custom_call.1} parent=59 // pred_fallthru
          _
      $region60: #{tpu_custom_call.1} parent=5 // pred_fallthru
        _
    $region6: #{tpu_custom_call.1} parent=1 // loop_footer
      %s23 = sadd.s32 1, %s19
    $region7: #{tpu_custom_call.1} parent=1 // loop_footer_branch
      %18 = sbr.rel target = $region3
    $region8: #{tpu_custom_call.1} parent=1 // loop_exit
      _
    %513 = vsyncpa [#allocation6], 1
    %s514 = scalar_lea.sflag [#allocation6], 1
    %515 = vsyncpa %s514, 1
    %516 = vsyncpa [#allocation9], 1
    %s517 = scalar_lea.sflag [#allocation9], 1
    %518 = vsyncpa %s517, 1
    %519 = vsyncpa [#allocation7], 1
    %s520 = scalar_lea.sflag [#allocation7], 1
    %521 = vsyncpa %s520, 1

</llo_original>
